<compile_context>
chip_gen: v6e
topology: v6e:2x2x1
jax: 0.10.0
libtpu: 0.0.40
codegen_flags: <defaults>
</compile_context>

<pallas_src>
import jax
import jax.numpy as jnp
from jax import lax
from jax.experimental import pallas as pl
from jax.experimental.pallas import tpu as pltpu


def _round_up(n, m):
    return (n + m - 1) // m * m


def _center_loss_kernel(x_ref, c_ref, labels_ref, out_ref):
    """One (C-tile, B-tile) grid step -> one partial sum (broadcast over 128 lanes)."""
    x = x_ref[...].astype(jnp.float32)        # (TB, D)
    c = c_ref[...].astype(jnp.float32)        # (TC, D)
    labels = labels_ref[...]                  # (TB, 1) int32

    tb, d = x.shape
    tc = c.shape[0]

    # ||x_b||^2 : (TB, 1) lane reduce, broadcasts sublane-aligned below.
    x_sq = jnp.sum(x * x, axis=1, keepdims=True)

    # ||c_j||^2 directly in lane-major (1, TC) via a tiny ones-matmul on the
    # MXU (8*D*TC MACs ~ 1/TB of the main tile matmul) -- avoids doing a
    # (TC, 1) -> (1, TC) cross-lane transpose every grid step.
    ones8 = jnp.ones((8, d), jnp.float32)
    c_sq = lax.dot_general(
        ones8, c * c,
        dimension_numbers=(((1,), (1,)), ((), ())),
        preferred_element_type=jnp.float32,
    )[0:1, :]                                 # (1, TC)

    # x @ centers^T without materializing the transpose: contract D with D.
    xc = lax.dot_general(
        x, c,
        dimension_numbers=(((1,), (1,)), ((), ())),
        preferred_element_type=jnp.float32,
    )                                         # (TB, TC)

    distmat = x_sq + c_sq - 2.0 * xc          # (TB, TC)

    # Global class index of each column of this C-tile.
    col0 = pl.program_id(0) * tc
    classes = col0 + lax.broadcasted_iota(jnp.int32, (tb, tc), 1)

    # clamp-after-mask quirk: every unmatched entry contributes exactly 1e-12.
    dist = jnp.where(labels == classes,
                     jnp.clip(distmat, 1e-12, 1e12),
                     jnp.float32(1e-12))

    out_ref[...] = jnp.broadcast_to(jnp.sum(dist), out_ref.shape)


def center_loss(x, centers, labels, *, tb=256, tc=1024,
                vmem_limit_bytes=48 * 1024 * 1024):
    """x: (B, D) float, centers: (C, D) float, labels: (B,) int -> scalar f32 loss."""
    B, D = x.shape
    C, Dc = centers.shape
    assert D == Dc, (D, Dc)

    # 8/128-aligned padded shapes.  Zero pad rows get label -1 so they never
    # match any class; every padded cell then contributes exactly 1e-12 and is
    # subtracted analytically below.
    d_pad = _round_up(D, 128)
    tb = min(tb, _round_up(B, 8))             # multiple of 8 (sublanes)
    tc = min(tc, _round_up(C, 128))           # multiple of 128 (lanes / MXU)
    b_pad = _round_up(B, tb)
    c_pad = _round_up(C, tc)
    nb = b_pad // tb
    nc = c_pad // tc

    x_p = jnp.pad(jnp.asarray(x, jnp.float32), ((0, b_pad - B), (0, d_pad - D)))
    c_p = jnp.pad(jnp.asarray(centers, jnp.float32),
                  ((0, c_pad - C), (0, d_pad - D)))
    lab_p = jnp.pad(jnp.asarray(labels, jnp.int32), (0, b_pad - B),
                    constant_values=-1).reshape(b_pad, 1)

    partials = pl.pallas_call(
        _center_loss_kernel,
        out_shape=jax.ShapeDtypeStruct((nc, nb, 1, 128), jnp.float32),
        grid=(nc, nb),  # centers-tile outer (stays resident), x tiles stream inner
        in_specs=[
            pl.BlockSpec((tb, d_pad), lambda j, i: (i, 0)),   # x
            pl.BlockSpec((tc, d_pad), lambda j, i: (j, 0)),   # centers
            pl.BlockSpec((tb, 1), lambda j, i: (i, 0)),       # labels
        ],
        out_specs=pl.BlockSpec((1, 1, 1, 128), lambda j, i: (j, i, 0, 0)),
        compiler_params=pltpu.CompilerParams(
            dimension_semantics=("parallel", "parallel"),
            vmem_limit_bytes=vmem_limit_bytes,
        ),
    )(x_p, c_p, lab_p)

    kernel_sum = jnp.sum(partials[:, :, 0, 0])
    # Remove the exact 1e-12 contributed by every padded (row, col) cell so the
    # result matches the unpadded PyTorch semantics.
    pad_cells = b_pad * c_pad - B * C
    total = kernel_sum - jnp.float32(pad_cells) * jnp.float32(1e-12)
    return total / jnp.float32(B)


def center_loss_ref(x, centers, labels):
    """Pure-JAX reference mirroring the PyTorch forward exactly."""
    B = x.shape[0]
    C = centers.shape[0]
    distmat = (
        jnp.sum(x**2, axis=1, keepdims=True)
        + jnp.sum(centers**2, axis=1, keepdims=True).T
        - 2.0 * (x @ centers.T)
    )
    mask = (labels[:, None] == jnp.arange(C)[None, :]).astype(jnp.float32)
    return jnp.sum(jnp.clip(distmat * mask, 1e-12, 1e12)) / B


if __name__ == "__main__":
    key = jax.random.PRNGKey(0)
    k1, k2 = jax.random.split(key)

    # Tolerance covers MXU multi-pass f32 matmul vs XLA dot precision defaults;
    # any structural bug (mask / tiling / padding correction) is orders larger.
    RTOL = ATOL = 1e-3

    # Case 1: the module's toy shapes (batch=8, feat_dim=32, num_classes=16).
    B, D, C = 8, 32, 16
    kx, kc, kl = jax.random.split(k1, 3)
    x = jax.random.normal(kx, (B, D), dtype=jnp.float32)
    centers = jax.random.normal(kc, (C, D), dtype=jnp.float32)  # stand-in for nn.Parameter randn
    labels = jax.random.randint(kl, (B,), 0, C, dtype=jnp.int32)

    loss = center_loss(x, centers, labels)
    jax.block_until_ready(loss)
    ref = center_loss_ref(x, centers, labels)
    assert jnp.allclose(loss, ref, rtol=RTOL, atol=ATOL), (loss, ref)

    # Case 2: non-aligned shapes + small tiles to exercise the multi-tile grid,
    # row/col/D padding and the analytic 1e-12 pad correction.
    B2, D2, C2 = 22, 40, 300
    k2x, k2c, k2l = jax.random.split(k2, 3)
    x2 = jax.random.normal(k2x, (B2, D2), dtype=jnp.float32)
    centers2 = jax.random.normal(k2c, (C2, D2), dtype=jnp.float32)
    labels2 = jax.random.randint(k2l, (B2,), 0, C2, dtype=jnp.int32)

    loss2 = center_loss(x2, centers2, labels2, tb=8, tc=128)
    jax.block_until_ready(loss2)
    ref2 = center_loss_ref(x2, centers2, labels2)
    assert jnp.allclose(loss2, ref2, rtol=RTOL, atol=ATOL), (loss2, ref2)

    print("KERNEL_OK")
</pallas_src>

<mosaic_0001>
module attributes {stable_mosaic.version = 11 : i64} {
  func.func @_center_loss_kernel(%arg0: i32, %arg1: i32, %arg2: memref<8x128xf32, #tpu.memory_space<vmem>>, %arg3: memref<128x128xf32, #tpu.memory_space<vmem>>, %arg4: memref<8x1xi32, #tpu.memory_space<vmem>>, %arg5: memref<1x1x1x128xf32, #tpu.memory_space<vmem>>) attributes {dimension_semantics = [#tpu.dimension_semantics<parallel>, #tpu.dimension_semantics<parallel>], iteration_bounds = array<i64: 1, 1>, scalar_prefetch = 0 : i64, scratch_operands = 0 : i64, tpu.core_type = #tpu.core_type<tc>, window_params = [{transform_indices = @transform_0, window_bounds = array<i64: 8, 128>}, {transform_indices = @transform_1, window_bounds = array<i64: 128, 128>}, {transform_indices = @transform_2, window_bounds = array<i64: 8, 1>}, {transform_indices = @transform_3, window_bounds = array<i64: 1, 1, 1, 128>}]} {
    %c0 = arith.constant 0 : index
    %c0_0 = arith.constant 0 : index
    %0 = vector.load %arg2[%c0, %c0_0] : memref<8x128xf32, #tpu.memory_space<vmem>>, vector<8x128xf32>
    %c0_1 = arith.constant 0 : index
    %c0_2 = arith.constant 0 : index
    %1 = vector.load %arg3[%c0_1, %c0_2] : memref<128x128xf32, #tpu.memory_space<vmem>>, vector<128x128xf32>
    %c0_3 = arith.constant 0 : index
    %c0_4 = arith.constant 0 : index
    %2 = vector.load %arg4[%c0_3, %c0_4] : memref<8x1xi32, #tpu.memory_space<vmem>>, vector<8x1xi32>
    %3 = arith.mulf %0, %0 : vector<8x128xf32>
    %cst = arith.constant dense<0.000000e+00> : vector<8xf32>
    %4 = vector.multi_reduction <add>, %3, %cst [1] : vector<8x128xf32> to vector<8xf32>
    %5 = vector.shape_cast %4 : vector<8xf32> to vector<8x1xf32>
    %cst_5 = arith.constant 1.000000e+00 : f32
    %6 = vector.broadcast %cst_5 : f32 to vector<8x128xf32>
    %7 = arith.mulf %1, %1 : vector<128x128xf32>
    %cst_6 = arith.constant dense<0.000000e+00> : vector<8x128xf32>
    %8 = tpu.matmul %6, %7, %cst_6 {dimension_numbers = #tpu.dot_dimension_numbers<[1], [1], [0], [0], [0, 0, 1, 0], [], []>} : vector<8x128xf32>, vector<128x128xf32>, vector<8x128xf32> -> vector<8x128xf32>
    %9 = vector.extract_strided_slice %8 {offsets = [0, 0], sizes = [1, 128], strides = [1, 1]} : vector<8x128xf32> to vector<1x128xf32>
    %cst_7 = arith.constant dense<0.000000e+00> : vector<8x128xf32>
    %10 = tpu.matmul %0, %1, %cst_7 {dimension_numbers = #tpu.dot_dimension_numbers<[1], [1], [0], [0], [0, 0, 1, 0], [], []>} : vector<8x128xf32>, vector<128x128xf32>, vector<8x128xf32> -> vector<8x128xf32>
    %11 = vector.broadcast %5 : vector<8x1xf32> to vector<8x128xf32>
    %12 = vector.broadcast %9 : vector<1x128xf32> to vector<8x128xf32>
    %13 = arith.addf %11, %12 : vector<8x128xf32>
    %cst_8 = arith.constant 2.000000e+00 : f32
    %14 = vector.broadcast %cst_8 : f32 to vector<8x128xf32>
    %15 = arith.mulf %14, %10 : vector<8x128xf32>
    %16 = arith.subf %13, %15 : vector<8x128xf32>
    %c128_i32 = arith.constant 128 : i32
    %17 = arith.muli %arg0, %c128_i32 : i32
    %18 = tpu.iota {dimensions = array<i32: 1>} : vector<8x128xi32>
    %19 = vector.broadcast %17 : i32 to vector<8x128xi32>
    %20 = arith.addi %19, %18 : vector<8x128xi32>
    %21 = vector.broadcast %2 : vector<8x1xi32> to vector<8x128xi32>
    %22 = arith.cmpi eq, %21, %20 : vector<8x128xi32>
    %cst_9 = arith.constant 9.99999996E-13 : f32
    %cst_10 = arith.constant 9.99999995E+11 : f32
    %23 = vector.broadcast %cst_9 : f32 to vector<8x128xf32>
    %24 = arith.maximumf %23, %16 : vector<8x128xf32>
    %25 = vector.broadcast %cst_10 : f32 to vector<8x128xf32>
    %26 = arith.minimumf %25, %24 : vector<8x128xf32>
    %cst_11 = arith.constant 9.99999996E-13 : f32
    %27 = vector.broadcast %cst_11 : f32 to vector<8x128xf32>
    %28 = arith.select %22, %26, %27 : vector<8x128xi1>, vector<8x128xf32>
    %29 = vector.shape_cast %28 : vector<8x128xf32> to vector<1x8x128xf32>
    %cst_12 = arith.constant dense<0.000000e+00> : vector<1xf32>
    %30 = vector.multi_reduction <add>, %29, %cst_12 [1, 2] : vector<1x8x128xf32> to vector<1xf32>
    %31 = vector.shape_cast %30 : vector<1xf32> to vector<1x1x1xf32>
    %32 = vector.extract %31[0, 0, 0] : f32 from vector<1x1x1xf32>
    %33 = vector.broadcast %32 : f32 to vector<1x1x1x128xf32>
    %c0_13 = arith.constant 0 : index
    %c0_14 = arith.constant 0 : index
    %c0_15 = arith.constant 0 : index
    %c0_16 = arith.constant 0 : index
    %34 = vector.load %arg5[%c0_13, %c0_14, %c0_15, %c0_16] : memref<1x1x1x128xf32, #tpu.memory_space<vmem>>, vector<1x1x1x128xf32>
    tpu.vector_store %arg5[%c0_13, %c0_14, %c0_15, %c0_16], %33 {strides = array<i32>} : memref<1x1x1x128xf32, #tpu.memory_space<vmem>>, vector<1x1x1x128xf32>,
    return
  }
  func.func @transform_0(%arg0: i32, %arg1: i32) -> (i32, i32) {
    %c0_i32 = arith.constant 0 : i32
    %c0_i32_0 = arith.constant 0 : i32
    return %arg1, %c0_i32 : i32, i32
  }
  func.func @transform_1(%arg0: i32, %arg1: i32) -> (i32, i32) {
    %c0_i32 = arith.constant 0 : i32
    %c0_i32_0 = arith.constant 0 : i32
    return %arg0, %c0_i32 : i32, i32
  }
  func.func @transform_2(%arg0: i32, %arg1: i32) -> (i32, i32) {
    %c0_i32 = arith.constant 0 : i32
    %c0_i32_0 = arith.constant 0 : i32
    return %arg1, %c0_i32 : i32, i32
  }
  func.func @transform_3(%arg0: i32, %arg1: i32) -> (i32, i32, i32, i32) {
    %c0_i32 = arith.constant 0 : i32
    %c0_i32_0 = arith.constant 0 : i32
    %c0_i32_1 = arith.constant 0 : i32
    return %arg0, %arg1, %c0_i32, %c0_i32_0 : i32, i32, i32, i32
  }
}

</mosaic_0001>

<llo_original>
// kernel: tpu_custom_call.1
$region0: #{tpu_custom_call.1}
  #allocation0 [shape = 'u32[]', space=smem, size = 0x4, offset = 0x4, fixed_abs, tag = 'smem constant byte address 0x4 - core index']
  #allocation1 [shape = 'u32[144,128]{1,0:T(1,128)}', space=vmem, size = 0x12000, scoped, tag = 'internal scratch']
  %s0 = inlined_call_operand.vmem [shape: f32[8,128], index: 0, kind: input, shape index: {}]
  %s1 = inlined_call_operand.hbm [shape: f32[128,128], index: 1, kind: input, shape index: {}]
  %s2 = inlined_call_operand.vmem [shape: s32[8,1], index: 2, kind: input, shape index: {}]
  %s3 = inlined_call_operand.hbm [shape: f32[1,1,1,128], index: 3, kind: output, shape index: {}]
  %s4 = sld [smem:[#allocation0]]
  $region26: #{tpu_custom_call.1} parent=0
    _
  %s6 = ssub.s32 1, %s4
  %s7 = scalar_select 0, %s6, %s4
  $region1: #{tpu_custom_call.1} parent=0
    #allocation2 [shape = 'u8[65536]{0}', space=vmem, size = 0x10000, scoped, tag = 'input window, operand 1, single buffered']
    #allocation3 [shape = 's32[1]{0}', space=sflag, size = 0x4, scoped, tag = 'scoped memory for tpu_custom_call.1']
    #allocation4 [shape = 's32[1]{0}', space=sflag, size = 0x4, scoped, tag = 'scoped memory for tpu_custom_call.1']
    #allocation5 [shape = 'u8[512]{0}', space=vmem, size = 0x400, scoped, tag = 'output window, operand 0, single buffered']
    %8 = vsyncpa [#allocation3], 0
    %9 = vsyncpa [#allocation4], 0
    // Predicated region
    $region2: #{tpu_custom_call.1} parent=1 // pred_check
      _
    $region3: #{tpu_custom_call.1} parent=1 // pred_check_branch
      %11 = sbr.rel (0) target = $region5
    $region4: #{tpu_custom_call.1} parent=1 // pred_region
      _
    $region5: #{tpu_custom_call.1} parent=1 // pred_fallthru
      _
    // Predicated region
    $region6: #{tpu_custom_call.1} parent=1 // pred_check
      _
    $region7: #{tpu_custom_call.1} parent=1 // pred_check_branch
      %13 = sbr.rel (0) target = $region9
    $region8: #{tpu_custom_call.1} parent=1 // pred_region
      %s15 = ssub.s32 2048, 2048
      %16 = vsyncadd [#allocation3], %s15
      %s17 = sshll.u32 [#allocation2], 4
      %s18 = int_to_ptr.vmem [resolvable:$true] %s17
      %23 = dma.hbm_to_vmem [thread:$0]  %s1, 2048, %s18, [#allocation3], 128, 128, 8
    $region9: #{tpu_custom_call.1} parent=1 // pred_fallthru
      _
    // Predicated region
    $region10: #{tpu_custom_call.1} parent=1 // pred_check
      _
    $region11: #{tpu_custom_call.1} parent=1 // pred_check_branch
      %25 = sbr.rel (0) target = $region13
    $region12: #{tpu_custom_call.1} parent=1 // pred_region
      _
    $region13: #{tpu_custom_call.1} parent=1 // pred_fallthru
      _
    // Predicated region
    $region14: #{tpu_custom_call.1} parent=1 // pred_check
      _
    $region15: #{tpu_custom_call.1} parent=1 // pred_check_branch
      %27 = sbr.rel (0) target = $region17
    $region16: #{tpu_custom_call.1} parent=1 // pred_region
      %28 = dma.done [#allocation3], 2048
    $region17: #{tpu_custom_call.1} parent=1 // pred_fallthru
      _
    %v29 = vld [vmem:[%s0] sm:$0xff]
    %v30 = vld [vmem:[#allocation2] sm:$0xff]
    %v31 = vld [vmem:[#allocation2 + $0x8] sm:$0xff]
    %v32 = vld [vmem:[#allocation2 + $0x10] sm:$0xff]
    %v33 = vld [vmem:[#allocation2 + $0x18] sm:$0xff]
    %v34 = vld [vmem:[#allocation2 + $0x20] sm:$0xff]
    %v35 = vld [vmem:[#allocation2 + $0x28] sm:$0xff]
    %v36 = vld [vmem:[#allocation2 + $0x30] sm:$0xff]
    %v37 = vld [vmem:[#allocation2 + $0x38] sm:$0xff]
    %v38 = vld [vmem:[#allocation2 + $0x40] sm:$0xff]
    %v39 = vld [vmem:[#allocation2 + $0x48] sm:$0xff]
    %v40 = vld [vmem:[#allocation2 + $0x50] sm:$0xff]
    %v41 = vld [vmem:[#allocation2 + $0x58] sm:$0xff]
    %v42 = vld [vmem:[#allocation2 + $0x60] sm:$0xff]
    %v43 = vld [vmem:[#allocation2 + $0x68] sm:$0xff]
    %v44 = vld [vmem:[#allocation2 + $0x70] sm:$0xff]
    %v45 = vld [vmem:[#allocation2 + $0x78] sm:$0xff]
    %v46 = vld [vmem:[%s2] sm:$0xff]
    %v47 = vmul.f32 %v29, %v29
    %48 = vadd.xlane.f32.xlu0 %v47
    %v49 = vpop.xlane.xlu0 %48
    %v50 = vmul.f32 %v30, %v30
    %v51 = vmul.f32 %v31, %v31
    %v52 = vmul.f32 %v32, %v32
    %v53 = vmul.f32 %v33, %v33
    %v54 = vmul.f32 %v34, %v34
    %v55 = vmul.f32 %v35, %v35
    %v56 = vmul.f32 %v36, %v36
    %v57 = vmul.f32 %v37, %v37
    %v58 = vmul.f32 %v38, %v38
    %v59 = vmul.f32 %v39, %v39
    %v60 = vmul.f32 %v40, %v40
    %v61 = vmul.f32 %v41, %v41
    %v62 = vmul.f32 %v42, %v42
    %v63 = vmul.f32 %v43, %v43
    %v64 = vmul.f32 %v44, %v44
    %v65 = vmul.f32 %v45, %v45
    %66 = vmatprep.subr.mxu0 0.0
    %67 = vmatpush1.xpose.msra.mxu0 %v65
    %68 = vmatprep.subr.mxu0 0.0
    %69 = vmatpush1.xpose.msra.mxu0 %v64
    %70 = vmatprep.subr.mxu0 0.0
    %71 = vmatpush1.xpose.msra.mxu0 %v63
    %72 = vmatprep.subr.mxu0 0.0
    %73 = vmatpush1.xpose.msra.mxu0 %v62
    %74 = vmatprep.subr.mxu0 0.0
    %75 = vmatpush1.xpose.msra.mxu0 %v61
    %76 = vmatprep.subr.mxu0 0.0
    %77 = vmatpush1.xpose.msra.mxu0 %v60
    %78 = vmatprep.subr.mxu0 0.0
    %79 = vmatpush1.xpose.msra.mxu0 %v59
    %80 = vmatprep.subr.mxu0 0.0
    %81 = vmatpush1.xpose.msra.mxu0 %v58
    %82 = vmatprep.subr.mxu0 0.0
    %83 = vmatpush1.xpose.msra.mxu0 %v57
    %84 = vmatprep.subr.mxu0 0.0
    %85 = vmatpush1.xpose.msra.mxu0 %v56
    %86 = vmatprep.subr.mxu0 0.0
    %87 = vmatpush1.xpose.msra.mxu0 %v55
    %88 = vmatprep.subr.mxu0 0.0
    %89 = vmatpush1.xpose.msra.mxu0 %v54
    %90 = vmatprep.subr.mxu0 0.0
    %91 = vmatpush1.xpose.msra.mxu0 %v53
    %92 = vmatprep.subr.mxu0 0.0
    %93 = vmatpush1.xpose.msra.mxu0 %v52
    %94 = vmatprep.subr.mxu0 0.0
    %95 = vmatpush1.xpose.msra.mxu0 %v51
    %96 = vmatprep.subr.mxu0 0.0
    %97 = vmatpush1.xpose.msra.mxu0 %v50
    %98 = vmatprep.subr.mxu0 0.0
    %99 = vmatpush2.xpose.msra.mxu0 0.0
    %100 = vmatprep.subr.mxu0 0.0
    %101 = vmatpush2.xpose.msra.mxu0 0.0
    %102 = vmatprep.subr.mxu0 0.0
    %103 = vmatpush2.xpose.msra.mxu0 0.0
    %104 = vmatprep.subr.mxu0 0.0
    %105 = vmatpush2.xpose.msra.mxu0 0.0
    %106 = vmatprep.subr.mxu0 0.0
    %107 = vmatpush2.xpose.msra.mxu0 0.0
    %108 = vmatprep.subr.mxu0 0.0
    %109 = vmatpush2.xpose.msra.mxu0 0.0
    %110 = vmatprep.subr.mxu0 0.0
    %111 = vmatpush2.xpose.msra.mxu0 0.0
    %112 = vmatprep.subr.mxu0 0.0
    %113 = vmatpush2.xpose.msra.mxu0 0.0
    %114 = vmatprep.subr.mxu0 0.0
    %115 = vmatpush2.xpose.msra.mxu0 0.0
    %116 = vmatprep.subr.mxu0 0.0
    %117 = vmatpush2.xpose.msra.mxu0 0.0
    %118 = vmatprep.subr.mxu0 0.0
    %119 = vmatpush2.xpose.msra.mxu0 0.0
    %120 = vmatprep.subr.mxu0 0.0
    %121 = vmatpush2.xpose.msra.mxu0 0.0
    %122 = vmatprep.subr.mxu0 0.0
    %123 = vmatpush2.xpose.msra.mxu0 0.0
    %124 = vmatprep.subr.mxu0 0.0
    %125 = vmatpush2.xpose.msra.mxu0 0.0
    %126 = vmatprep.subr.mxu0 0.0
    %127 = vmatpush2.xpose.msra.mxu0 0.0
    %128 = vmatprep.subr.mxu0 0.0
    %129 = vmatpush2.xpose.msra.mxu0 0.0
    %130 = vmatprep.mubr.f32.mxu0 0.0
    %131 = vmatmul.mubr.f32.gmra.mxu0 1.0
    %v132 = vpop.f32.mrf.mxu0
    %v133 = vadd.f32 0.0, %v132
    %v134 = vpop.f32.mrf.mxu0
    %135 = vdwg.mxu0
    %136 = vmatprep.subr.mxu0 0.0
    %137 = vmatpush1.xpose.msra.mxu0 %v45
    %138 = vmatprep.subr.mxu0 0.0
    %139 = vmatpush1.xpose.msra.mxu0 %v44
    %140 = vmatprep.subr.mxu0 0.0
    %141 = vmatpush1.xpose.msra.mxu0 %v43
    %142 = vmatprep.subr.mxu0 0.0
    %143 = vmatpush1.xpose.msra.mxu0 %v42
    %144 = vmatprep.subr.mxu0 0.0
    %145 = vmatpush1.xpose.msra.mxu0 %v41
    %146 = vmatprep.subr.mxu0 0.0
    %147 = vmatpush1.xpose.msra.mxu0 %v40
    %148 = vmatprep.subr.mxu0 0.0
    %149 = vmatpush1.xpose.msra.mxu0 %v39
    %150 = vmatprep.subr.mxu0 0.0
    %151 = vmatpush1.xpose.msra.mxu0 %v38
    %152 = vmatprep.subr.mxu0 0.0
    %153 = vmatpush1.xpose.msra.mxu0 %v37
    %154 = vmatprep.subr.mxu0 0.0
    %155 = vmatpush1.xpose.msra.mxu0 %v36
    %156 = vmatprep.subr.mxu0 0.0
    %157 = vmatpush1.xpose.msra.mxu0 %v35
    %158 = vmatprep.subr.mxu0 0.0
    %159 = vmatpush1.xpose.msra.mxu0 %v34
    %160 = vmatprep.subr.mxu0 0.0
    %161 = vmatpush1.xpose.msra.mxu0 %v33
    %162 = vmatprep.subr.mxu0 0.0
    %163 = vmatpush1.xpose.msra.mxu0 %v32
    %164 = vmatprep.subr.mxu0 0.0
    %165 = vmatpush1.xpose.msra.mxu0 %v31
    %166 = vmatprep.subr.mxu0 0.0
    %167 = vmatpush1.xpose.msra.mxu0 %v30
    %168 = vmatprep.subr.mxu0 0.0
    %169 = vmatpush2.xpose.msra.mxu0 0.0
    %170 = vmatprep.subr.mxu0 0.0
    %171 = vmatpush2.xpose.msra.mxu0 0.0
    %172 = vmatprep.subr.mxu0 0.0
    %173 = vmatpush2.xpose.msra.mxu0 0.0
    %174 = vmatprep.subr.mxu0 0.0
    %175 = vmatpush2.xpose.msra.mxu0 0.0
    %176 = vmatprep.subr.mxu0 0.0
    %177 = vmatpush2.xpose.msra.mxu0 0.0
    %178 = vmatprep.subr.mxu0 0.0
    %179 = vmatpush2.xpose.msra.mxu0 0.0
    %180 = vmatprep.subr.mxu0 0.0
    %181 = vmatpush2.xpose.msra.mxu0 0.0
    %182 = vmatprep.subr.mxu0 0.0
    %183 = vmatpush2.xpose.msra.mxu0 0.0
    %184 = vmatprep.subr.mxu0 0.0
    %185 = vmatpush2.xpose.msra.mxu0 0.0
    %186 = vmatprep.subr.mxu0 0.0
    %187 = vmatpush2.xpose.msra.mxu0 0.0
    %188 = vmatprep.subr.mxu0 0.0
    %189 = vmatpush2.xpose.msra.mxu0 0.0
    %190 = vmatprep.subr.mxu0 0.0
    %191 = vmatpush2.xpose.msra.mxu0 0.0
    %192 = vmatprep.subr.mxu0 0.0
    %193 = vmatpush2.xpose.msra.mxu0 0.0
    %194 = vmatprep.subr.mxu0 0.0
    %195 = vmatpush2.xpose.msra.mxu0 0.0
    %196 = vmatprep.subr.mxu0 0.0
    %197 = vmatpush2.xpose.msra.mxu0 0.0
    %198 = vmatprep.subr.mxu0 0.0
    %199 = vmatpush2.xpose.msra.mxu0 0.0
    %200 = vmatprep.mubr.f32.mxu0 0.0
    %201 = vmatmul.mubr.f32.gmra.mxu0 %v29
    %v202 = vpop.f32.mrf.mxu0
    %v203 = vadd.f32 0.0, %v202
    %v204 = vpop.f32.mrf.mxu0
    %205 = vdwg.mxu0
    %v206 = vlaneseq
    %v207 = vshrl.u32 %v206, 7
    %v208 = vsub.s32 0, %v207
    %v209 = vrot.slane %v133, %v208
    %v210 = vadd.f32 %v49, %v209
    %v211 = vmul.f32 %v203, 2.0
    %v212 = vsub.f32 %v210, %v211
    %s213 = smul.u32 0, 128
    %v214 = vlaneseq
    %v215 = vand.u32 %v214, 127
    %v216 = vstv %s213
    %v217 = vadd.s32 %v216, %v215
    %218 = vset.pattern.permute.xlu0 0
    %219 = vperm.xlu0 %218, %v46
    %v220 = vpop.permute.xlu0 %219
    %vm221 = vcmp.eq.s32.totalorder %v220, %v217
    %v222 = vmax.f32 %v212, 1e-12
    %v223 = vmin.f32 %v222, 1e+12
    %v224 = vsel %vm221, %v223, 1e-12
    %225 = vadd.xlane.f32.xlu0 %v224
    %v226 = vpop.xlane.xlu0 %225
    %v227 = vrot.slane %v226, 4
    %v228 = vadd.f32 %v226, %v227
    %v229 = vrot.slane %v228, 2
    %v230 = vadd.f32 %v228, %v229
    %v231 = vrot.slane %v230, 1
    %v232 = vadd.f32 %v230, %v231
    %s233 = vtos %v232
    %v234 = vstv %s233
    %235 = vst [vmem:[#allocation5] sm:$0x1] %v234
    // Predicated region
    $region18: #{tpu_custom_call.1} parent=1 // pred_check
      _
    $region19: #{tpu_custom_call.1} parent=1 // pred_check_branch
      %237 = sbr.rel (0) target = $region21
    $region20: #{tpu_custom_call.1} parent=1 // pred_region
      %s239 = ssub.s32 16, 16
      %240 = vsyncadd [#allocation4], %s239
      %s242 = sshll.u32 [#allocation5], 4
      %s243 = int_to_ptr.vmem [resolvable:$true] %s242
      %245 = dma.vmem_to_hbm [thread:$0]  %s243, 16, %s3, [#allocation4]
    $region21: #{tpu_custom_call.1} parent=1 // pred_fallthru
      _
    // Predicated region
    $region22: #{tpu_custom_call.1} parent=1 // pred_check
      _
    $region23: #{tpu_custom_call.1} parent=1 // pred_check_branch
      %247 = sbr.rel (0) target = $region25
    $region24: #{tpu_custom_call.1} parent=1 // pred_region
      %248 = dma.done [#allocation4], 16
    $region25: #{tpu_custom_call.1} parent=1 // pred_fallthru
      _
    %249 = vsyncpa [#allocation3], 1
    %250 = vsyncpa [#allocation4], 1

</llo_original>
